<compile_context>
chip_gen: v7x
topology: tpu7x:2x2x1
jax: 0.10.0
libtpu: 0.0.40
codegen_flags: <defaults>
</compile_context>

<pallas_src>
import functools

import jax
import jax.numpy as jnp
from jax import lax
from jax.experimental import pallas as pl
from jax.experimental.pallas import tpu as pltpu

_LANE = 128


def _round_up(x, m):
    return ((x + m - 1) // m) * m


def _gelu_exact(x):
    # torch.nn.GELU() default is the exact (erf-based) formulation.
    return 0.5 * x * (1.0 + lax.erf(x * 0.7071067811865476))


def feature_ir_kernel(x_ref, w1_ref, b1_ref, w2_ref, b2_ref, o_ref, h_ref):
    # Grid = (m_tiles, n_tiles); the n axis is last, hence innermost/sequential,
    # so the h scratch written at j == 0 is valid for all n-tiles of this m-tile.
    @pl.when(pl.program_id(1) == 0)
    def _():
        h = jnp.dot(x_ref[...], w1_ref[...], preferred_element_type=jnp.float32)
        h = h + b1_ref[...].astype(jnp.float32)
        h_ref[...] = _gelu_exact(h).astype(h_ref.dtype)

    y = jnp.dot(h_ref[...], w2_ref[...], preferred_element_type=jnp.float32)
    y = y + b2_ref[...].astype(jnp.float32)
    o_ref[...] = y.astype(o_ref.dtype)


def _pick_tn(n_pad, max_tn):
    # Largest multiple of 128 that divides n_pad and is <= max_tn.
    best = _LANE
    t = _LANE
    while t <= min(max_tn, n_pad):
        if n_pad % t == 0:
            best = t
        t += _LANE
    return best


@functools.partial(jax.jit, static_argnames=("max_tm", "max_tn", "compute_dtype"))
def feature_ir_layer(x, w1, b1, w2, b2, *, max_tm=128, max_tn=512,
                     compute_dtype=None):
    """x: (..., in_dim) -> (..., out_dim); MLP: Linear -> GELU -> Linear."""
    in_dim = x.shape[-1]
    out_dim = w1.shape[1]
    lead_shape = x.shape[:-1]
    out_dtype = x.dtype

    if compute_dtype is None:
        compute_dtype = w1.dtype
    compute_dtype = jnp.dtype(compute_dtype)

    x2d = x.reshape(-1, in_dim).astype(compute_dtype)
    M = x2d.shape[0]

    # Dtype-aware sublane packing (8 for 4B, 16 for 2B, 32 for 1B dtypes).
    itemsize = compute_dtype.itemsize
    sublane = max(8, 32 // max(itemsize, 1))

    # Lane-dense padding of the hidden/output feature dim (multiple of 128).
    n_pad = _round_up(out_dim, _LANE)
    tn = _pick_tn(n_pad, max_tn)

    # Row tiling: pick tm to minimize padding waste (divisor-friendly) instead
    # of a fixed 256 that could pad e.g. M=576 to 768.
    m_tiles = max(1, -(-M // max_tm))
    tm = min(_round_up(-(-M // m_tiles), sublane), _round_up(M, sublane))
    m_pad = _round_up(M, tm)

    # Zero padding keeps numerics exact: padded W1 cols + padded b1 give h=0 in
    # the pad lanes, gelu(0)=0, and padded W2 rows/cols contribute nothing to
    # the real output columns (padded output columns are sliced off below).
    x_p = x2d if m_pad == M else jnp.pad(x2d, ((0, m_pad - M), (0, 0)))
    w1_p = jnp.pad(w1, ((0, 0), (0, n_pad - out_dim))).astype(compute_dtype)
    b1_p = jnp.pad(b1, (0, n_pad - out_dim)).reshape(1, n_pad)
    w2_p = jnp.pad(w2, ((0, n_pad - out_dim), (0, n_pad - out_dim))).astype(
        compute_dtype)
    b2_p = jnp.pad(b2, (0, n_pad - out_dim)).reshape(1, n_pad)

    cb = compute_dtype.itemsize
    ob = jnp.dtype(out_dtype).itemsize
    bb = jnp.dtype(b1_p.dtype).itemsize

    # Explicit scoped-VMEM budget from the actual block + scratch sizes,
    # double-buffered inputs/outputs, ~25% headroom.
    vmem_bytes = (2 * (tm * in_dim * cb          # x block
                       + in_dim * n_pad * cb     # W1 (resident, constant idx)
                       + n_pad * bb              # b1
                       + n_pad * tn * cb         # W2 column block (streamed)
                       + tn * bb                 # b2 column block
                       + tm * tn * ob)           # out block
                  + tm * n_pad * cb)             # h scratch
    vmem_limit = int(vmem_bytes * 1.25) + (2 << 20)
    vmem_limit = max(16 << 20, min(vmem_limit, 64 << 20))

    cost = pl.CostEstimate(
        flops=2 * m_pad * (in_dim * n_pad + n_pad * n_pad),
        transcendentals=m_pad * n_pad,
        bytes_accessed=(m_pad * in_dim * cb
                        + (in_dim * n_pad + n_pad * n_pad) * cb
                        + 2 * n_pad * bb
                        + m_pad * n_pad * ob),
    )

    grid = (m_pad // tm, n_pad // tn)

    out = pl.pallas_call(
        feature_ir_kernel,
        out_shape=jax.ShapeDtypeStruct((m_pad, n_pad), out_dtype),
        grid_spec=pltpu.PrefetchScalarGridSpec(
            num_scalar_prefetch=0,
            grid=grid,
            in_specs=[
                pl.BlockSpec((tm, in_dim), lambda i, j: (i, 0)),     # x
                pl.BlockSpec((in_dim, n_pad), lambda i, j: (0, 0)),  # W1
                pl.BlockSpec((1, n_pad), lambda i, j: (0, 0)),       # b1
                pl.BlockSpec((n_pad, tn), lambda i, j: (0, j)),      # W2 cols
                pl.BlockSpec((1, tn), lambda i, j: (0, j)),          # b2 cols
            ],
            out_specs=pl.BlockSpec((tm, tn), lambda i, j: (i, j)),
            scratch_shapes=[pltpu.VMEM((tm, n_pad), compute_dtype)],
        ),
        compiler_params=pltpu.CompilerParams(
            dimension_semantics=("parallel", "arbitrary"),
            vmem_limit_bytes=vmem_limit),
        cost_estimate=cost,
    )(x_p, w1_p, b1_p, w2_p, b2_p)

    out = out[:M, :out_dim]
    return out.reshape(*lead_shape, out_dim)


def _reference(x, w1, b1, w2, b2):
    h = jnp.dot(x, w1, precision=lax.Precision.HIGHEST) + b1
    h = jax.nn.gelu(h, approximate=False)
    return jnp.dot(h, w2, precision=lax.Precision.HIGHEST) + b2


if __name__ == "__main__":
    key = jax.random.PRNGKey(0)
    batch, seq = 2, 8
    in_dim, out_dim = 32, 64

    k_x, k_w1, k_b1, k_w2, k_b2 = jax.random.split(key, 5)
    x = jax.random.normal(k_x, (batch, seq, in_dim), dtype=jnp.float32)

    # PyTorch Linear init shapes are weight (out,in), bias (out,); we store
    # weights pre-transposed as (in, out).
    lim1 = 1.0 / jnp.sqrt(in_dim)
    lim2 = 1.0 / jnp.sqrt(out_dim)
    w1 = jax.random.uniform(k_w1, (in_dim, out_dim), jnp.float32, -lim1, lim1)
    b1 = jax.random.uniform(k_b1, (out_dim,), jnp.float32, -lim1, lim1)
    w2 = jax.random.uniform(k_w2, (out_dim, out_dim), jnp.float32, -lim2, lim2)
    b2 = jax.random.uniform(k_b2, (out_dim,), jnp.float32, -lim2, lim2)

    # 1) Basic f32 path, single (m, n) tile.
    y = jax.block_until_ready(feature_ir_layer(x, w1, b1, w2, b2))
    y_ref = _reference(x, w1, b1, w2, b2)
    assert y.shape == (batch, seq, out_dim)
    assert jnp.allclose(y, y_ref, atol=1e-4, rtol=1e-4)

    # 2) Non-divisible, larger M: exercises row padding + multiple m-tiles.
    x_big = jax.random.normal(k_x, (3, 197, in_dim), dtype=jnp.float32)
    y_big = jax.block_until_ready(feature_ir_layer(x_big, w1, b1, w2, b2))
    assert jnp.allclose(y_big, _reference(x_big, w1, b1, w2, b2),
                        atol=1e-4, rtol=1e-4)

    # 3) Multiple n-tiles (streamed W2 columns + h-scratch reuse): out_dim=320
    #    pads to 384; max_tn=128 forces a 3-step n axis.
    out_dim2 = 320
    w1b = jax.random.uniform(k_w1, (in_dim, out_dim2), jnp.float32, -lim1, lim1)
    b1b = jax.random.uniform(k_b1, (out_dim2,), jnp.float32, -lim1, lim1)
    lim2b = 1.0 / jnp.sqrt(out_dim2)
    w2b = jax.random.uniform(k_w2, (out_dim2, out_dim2), jnp.float32,
                             -lim2b, lim2b)
    b2b = jax.random.uniform(k_b2, (out_dim2,), jnp.float32, -lim2b, lim2b)
    y_n = jax.block_until_ready(
        feature_ir_layer(x_big, w1b, b1b, w2b, b2b, max_tn=128))
    assert jnp.allclose(y_n, _reference(x_big, w1b, b1b, w2b, b2b),
                        atol=1e-4, rtol=1e-4)

    # 4) bf16 weight path (fast MXU operands, f32 accumulation).
    w1h, w2h = w1.astype(jnp.bfloat16), w2.astype(jnp.bfloat16)
    y_bf = jax.block_until_ready(feature_ir_layer(x, w1h, b1, w2h, b2))
    y_bf_ref = _reference(x.astype(jnp.bfloat16).astype(jnp.float32),
                          w1h.astype(jnp.float32), b1,
                          w2h.astype(jnp.float32), b2)
    assert y_bf.dtype == x.dtype
    assert jnp.allclose(y_bf, y_bf_ref, atol=2e-2, rtol=2e-2)

    print("KERNEL_OK")
</pallas_src>

<mosaic_0001>
module attributes {stable_mosaic.version = 11 : i64} {
  func.func @feature_ir_kernel(%arg0: i32, %arg1: i32, %arg2: memref<16x32xf32, #tpu.memory_space<vmem>>, %arg3: memref<32x128xf32, #tpu.memory_space<vmem>>, %arg4: memref<1x128xf32, #tpu.memory_space<vmem>>, %arg5: memref<128x128xf32, #tpu.memory_space<vmem>>, %arg6: memref<1x128xf32, #tpu.memory_space<vmem>>, %arg7: memref<16x128xf32, #tpu.memory_space<vmem>>, %arg8: memref<16x128xf32, #tpu.memory_space<vmem>>) attributes {dimension_semantics = [#tpu.dimension_semantics<parallel>, #tpu.dimension_semantics<arbitrary>], iteration_bounds = array<i64: 1, 1>, scalar_prefetch = 0 : i64, scratch_operands = 1 : i64, tpu.core_type = #tpu.core_type<tc>, window_params = [{transform_indices = @transform_0, window_bounds = array<i64: 16, 32>}, {pipeline_mode = #tpu.pipeline_mode<synchronous>, transform_indices = @transform_1, window_bounds = array<i64: 32, 128>}, {pipeline_mode = #tpu.pipeline_mode<synchronous>, transform_indices = @transform_2, window_bounds = array<i64: 1, 128>}, {transform_indices = @transform_3, window_bounds = array<i64: 128, 128>}, {transform_indices = @transform_4, window_bounds = array<i64: 1, 128>}, {transform_indices = @transform_5, window_bounds = array<i64: 16, 128>}]} {
    %c0_i32 = arith.constant 0 : i32
    %0 = arith.cmpi eq, %arg1, %c0_i32 : i32
    %1 = arith.extui %0 : i1 to i32
    %c0_i32_0 = arith.constant 0 : i32
    %2 = arith.cmpi ne, %1, %c0_i32_0 : i32
    scf.if %2 {
      %c0_8 = arith.constant 0 : index
      %c0_9 = arith.constant 0 : index
      %10 = vector.load %arg2[%c0_8, %c0_9] : memref<16x32xf32, #tpu.memory_space<vmem>>, vector<16x32xf32>
      %c0_10 = arith.constant 0 : index
      %c0_11 = arith.constant 0 : index
      %11 = vector.load %arg3[%c0_10, %c0_11] : memref<32x128xf32, #tpu.memory_space<vmem>>, vector<32x128xf32>
      %cst_12 = arith.constant dense<0.000000e+00> : vector<16x128xf32>
      %12 = tpu.matmul %10, %11, %cst_12 {dimension_numbers = #tpu.dot_dimension_numbers<[1], [0], [0], [1], [0, 0, 1, 1], [], []>} : vector<16x32xf32>, vector<32x128xf32>, vector<16x128xf32> -> vector<16x128xf32>
      %c0_13 = arith.constant 0 : index
      %c0_14 = arith.constant 0 : index
      %13 = vector.load %arg4[%c0_13, %c0_14] : memref<1x128xf32, #tpu.memory_space<vmem>>, vector<1x128xf32>
      %14 = vector.broadcast %13 : vector<1x128xf32> to vector<16x128xf32>
      %15 = arith.addf %12, %14 : vector<16x128xf32>
      %cst_15 = arith.constant 5.000000e-01 : f32
      %16 = vector.broadcast %cst_15 : f32 to vector<16x128xf32>
      %17 = arith.mulf %16, %15 : vector<16x128xf32>
      %cst_16 = arith.constant 0.707106769 : f32
      %18 = vector.broadcast %cst_16 : f32 to vector<16x128xf32>
      %19 = arith.mulf %15, %18 : vector<16x128xf32>
      %20 = math.erf %19 : vector<16x128xf32>
      %cst_17 = arith.constant 1.000000e+00 : f32
      %21 = vector.broadcast %cst_17 : f32 to vector<16x128xf32>
      %22 = arith.addf %21, %20 : vector<16x128xf32>
      %23 = arith.mulf %17, %22 : vector<16x128xf32>
      %c0_18 = arith.constant 0 : index
      %c0_19 = arith.constant 0 : index
      %24 = vector.load %arg8[%c0_18, %c0_19] : memref<16x128xf32, #tpu.memory_space<vmem>>, vector<16x128xf32>
      tpu.vector_store %arg8[%c0_18, %c0_19], %23 {strides = array<i32>} : memref<16x128xf32, #tpu.memory_space<vmem>>, vector<16x128xf32>,
    } else {
    }
    %c0 = arith.constant 0 : index
    %c0_1 = arith.constant 0 : index
    %3 = vector.load %arg8[%c0, %c0_1] : memref<16x128xf32, #tpu.memory_space<vmem>>, vector<16x128xf32>
    %c0_2 = arith.constant 0 : index
    %c0_3 = arith.constant 0 : index
    %4 = vector.load %arg5[%c0_2, %c0_3] : memref<128x128xf32, #tpu.memory_space<vmem>>, vector<128x128xf32>
    %cst = arith.constant dense<0.000000e+00> : vector<16x128xf32>
    %5 = tpu.matmul %3, %4, %cst {dimension_numbers = #tpu.dot_dimension_numbers<[1], [0], [0], [1], [0, 0, 1, 1], [], []>} : vector<16x128xf32>, vector<128x128xf32>, vector<16x128xf32> -> vector<16x128xf32>
    %c0_4 = arith.constant 0 : index
    %c0_5 = arith.constant 0 : index
    %6 = vector.load %arg6[%c0_4, %c0_5] : memref<1x128xf32, #tpu.memory_space<vmem>>, vector<1x128xf32>
    %7 = vector.broadcast %6 : vector<1x128xf32> to vector<16x128xf32>
    %8 = arith.addf %5, %7 : vector<16x128xf32>
    %c0_6 = arith.constant 0 : index
    %c0_7 = arith.constant 0 : index
    %9 = vector.load %arg7[%c0_6, %c0_7] : memref<16x128xf32, #tpu.memory_space<vmem>>, vector<16x128xf32>
    tpu.vector_store %arg7[%c0_6, %c0_7], %8 {strides = array<i32>} : memref<16x128xf32, #tpu.memory_space<vmem>>, vector<16x128xf32>,
    return
  }
  func.func @transform_0(%arg0: i32, %arg1: i32) -> (i32, i32) {
    %c0_i32 = arith.constant 0 : i32
    %c0_i32_0 = arith.constant 0 : i32
    return %arg0, %c0_i32 : i32, i32
  }
  func.func @transform_1(%arg0: i32, %arg1: i32) -> (i32, i32) {
    %c0_i32 = arith.constant 0 : i32
    %c0_i32_0 = arith.constant 0 : i32
    %c0_i32_1 = arith.constant 0 : i32
    return %c0_i32, %c0_i32_0 : i32, i32
  }
  func.func @transform_2(%arg0: i32, %arg1: i32) -> (i32, i32) {
    %c0_i32 = arith.constant 0 : i32
    %c0_i32_0 = arith.constant 0 : i32
    %c0_i32_1 = arith.constant 0 : i32
    return %c0_i32, %c0_i32_0 : i32, i32
  }
  func.func @transform_3(%arg0: i32, %arg1: i32) -> (i32, i32) {
    %c0_i32 = arith.constant 0 : i32
    %c0_i32_0 = arith.constant 0 : i32
    return %c0_i32, %arg1 : i32, i32
  }
  func.func @transform_4(%arg0: i32, %arg1: i32) -> (i32, i32) {
    %c0_i32 = arith.constant 0 : i32
    %c0_i32_0 = arith.constant 0 : i32
    return %c0_i32, %arg1 : i32, i32
  }
  func.func @transform_5(%arg0: i32, %arg1: i32) -> (i32, i32) {
    %c0_i32 = arith.constant 0 : i32
    return %arg0, %arg1 : i32, i32
  }
}

</mosaic_0001>

<llo_original>
// kernel: feature_ir_layer.1
$region0: #{feature_ir_layer.1}
  #allocation0 [shape = 'u32[]', space=smem, size = 0x4, offset = 0x4, fixed_abs, tag = 'smem constant byte address 0x4 - core index']
  #allocation1 [shape = 'u32[144,128]{1,0:T(1,128)}', space=vmem, size = 0x12000, scoped, tag = 'internal scratch']
  #allocation2 [shape = 'f32[16,128]{1,0:T(8,128)}', space=vmem, size = 0x2000, scoped, tag = 'scratch operand']
  %s0 = inlined_call_operand.vmem [shape: f32[16,32], index: 0, kind: input, shape index: {}]
  %s1 = inlined_call_operand.vmem [shape: f32[32,128], index: 1, kind: input, shape index: {}]
  %s2 = inlined_call_operand.vmem [shape: f32[1,128], index: 2, kind: input, shape index: {}]
  %s3 = inlined_call_operand.vmem [shape: f32[128,128], index: 3, kind: input, shape index: {}]
  %s4 = inlined_call_operand.vmem [shape: f32[1,128], index: 4, kind: input, shape index: {}]
  %s5 = inlined_call_operand.vmem [shape: f32[16,128], index: 5, kind: output, shape index: {}]
  %s6 = sld [smem:[#allocation0]]
  $region34: #{feature_ir_layer.1} parent=0
    _
  %s8 = ssub.s32 1, %s6
  %s9 = scalar_select 0, %s8, %s6
  // Predicated region
  $region2: #{feature_ir_layer.1} parent=0 // pred_check
    _
  $region3: #{feature_ir_layer.1} parent=0 // pred_check_branch
    %11 = sbr.rel (0) target = $region5
  $region4: #{feature_ir_layer.1} parent=0 // pred_region
    _
  $region5: #{feature_ir_layer.1} parent=0 // pred_fallthru
    _
  // Predicated region
  $region6: #{feature_ir_layer.1} parent=0 // pred_check
    _
  $region7: #{feature_ir_layer.1} parent=0 // pred_check_branch
    %13 = sbr.rel (0) target = $region9
  $region8: #{feature_ir_layer.1} parent=0 // pred_region
    _
  $region9: #{feature_ir_layer.1} parent=0 // pred_fallthru
    _
  // Predicated region
  $region10: #{feature_ir_layer.1} parent=0 // pred_check
    _
  $region11: #{feature_ir_layer.1} parent=0 // pred_check_branch
    %15 = sbr.rel (0) target = $region13
  $region12: #{feature_ir_layer.1} parent=0 // pred_region
    _
  $region13: #{feature_ir_layer.1} parent=0 // pred_fallthru
    _
  // Predicated region
  $region14: #{feature_ir_layer.1} parent=0 // pred_check
    _
  $region15: #{feature_ir_layer.1} parent=0 // pred_check_branch
    %17 = sbr.rel (0) target = $region17
  $region16: #{feature_ir_layer.1} parent=0 // pred_region
    _
  $region17: #{feature_ir_layer.1} parent=0 // pred_fallthru
    _
  // Predicated region
  $region18: #{feature_ir_layer.1} parent=0 // pred_check
    _
  $region19: #{feature_ir_layer.1} parent=0 // pred_check_branch
    %19 = sbr.rel (0) target = $region21
  $region20: #{feature_ir_layer.1} parent=0 // pred_region
    _
  $region21: #{feature_ir_layer.1} parent=0 // pred_fallthru
    _
  %p20 = scmp.eq.s32.totalorder 0, 0
  // Predicated region
  $region22: #{feature_ir_layer.1} parent=0 // pred_check
    %p21 = pneg %p20
  $region23: #{feature_ir_layer.1} parent=0 // pred_check_branch
    %23 = sbr.rel (%p21) target = $region25
  $region24: #{feature_ir_layer.1} parent=0 // pred_region
    %v24 = vld [vmem:[%s0] sm:$0xff]
    %v25 = vld [vmem:[%s0 + $0x8] sm:$0xff]
    %v26 = vld [vmem:[%s1] sm:$0xff]
    %v27 = vld [vmem:[%s1 + $0x8] sm:$0xff]
    %v28 = vld [vmem:[%s1 + $0x10] sm:$0xff]
    %v29 = vld [vmem:[%s1 + $0x18] sm:$0xff]
    %v30 = vld [vmem:[%s2] sm:$0x1]
    %v32 = vlaneseq
    %v33 = vshrl.u32 %v32, 7
    %v34 = vsub.s32 0, %v33
    %v35 = vrot.slane %v30, %v34
    %vm37 = vcmask 261120
    %v39 = vsel %vm37, %v24, 0
    %v42 = vsel %vm37, %v25, 0
    %44 = vmatprep.subr.mxu0 0.0
    %45 = vmatpush1.msra.mxu0 %v26
    %46 = vmatprep.subr.mxu0 0.0
    %47 = vmatpush1.msra.mxu0 %v27
    %48 = vmatprep.subr.mxu0 0.0
    %49 = vmatpush1.msra.mxu0 %v28
    %50 = vmatprep.subr.mxu0 0.0
    %51 = vmatpush1.msra.mxu0 %v29
    %52 = vmatprep.subr.mxu0 0.0
    %53 = vmatpush1.msra.mxu0 0.0
    %54 = vmatprep.subr.mxu0 0.0
    %55 = vmatpush1.msra.mxu0 0.0
    %56 = vmatprep.subr.mxu0 0.0
    %57 = vmatpush1.msra.mxu0 0.0
    %58 = vmatprep.subr.mxu0 0.0
    %59 = vmatpush1.msra.mxu0 0.0
    %60 = vmatprep.subr.mxu0 0.0
    %61 = vmatpush1.msra.mxu0 0.0
    %62 = vmatprep.subr.mxu0 0.0
    %63 = vmatpush1.msra.mxu0 0.0
    %64 = vmatprep.subr.mxu0 0.0
    %65 = vmatpush1.msra.mxu0 0.0
    %66 = vmatprep.subr.mxu0 0.0
    %67 = vmatpush1.msra.mxu0 0.0
    %68 = vmatprep.subr.mxu0 0.0
    %69 = vmatpush1.msra.mxu0 0.0
    %70 = vmatprep.subr.mxu0 0.0
    %71 = vmatpush1.msra.mxu0 0.0
    %72 = vmatprep.subr.mxu0 0.0
    %73 = vmatpush1.msra.mxu0 0.0
    %74 = vmatprep.subr.mxu0 0.0
    %75 = vmatpush1.msra.mxu0 0.0
    %76 = vmatprep.subr.mxu0 0.0
    %77 = vmatpush1.msra.mxu0 0.0
    %78 = vmatprep.subr.mxu0 0.0
    %79 = vmatpush1.msra.mxu0 0.0
    %80 = vmatprep.subr.mxu0 0.0
    %81 = vmatpush1.msra.mxu0 0.0
    %82 = vmatprep.subr.mxu0 0.0
    %83 = vmatpush1.msra.mxu0 0.0
    %84 = vmatprep.subr.mxu0 0.0
    %85 = vmatpush1.msra.mxu0 0.0
    %86 = vmatprep.subr.mxu0 0.0
    %87 = vmatpush1.msra.mxu0 0.0
    %88 = vmatprep.subr.mxu0 0.0
    %89 = vmatpush1.msra.mxu0 0.0
    %90 = vmatprep.subr.mxu0 0.0
    %91 = vmatpush1.msra.mxu0 0.0
    %92 = vmatprep.subr.mxu0 0.0
    %93 = vmatpush1.msra.mxu0 0.0
    %94 = vmatprep.subr.mxu0 0.0
    %95 = vmatpush1.msra.mxu0 0.0
    %96 = vmatprep.subr.mxu0 0.0
    %97 = vmatpush1.msra.mxu0 0.0
    %98 = vmatprep.subr.mxu0 0.0
    %99 = vmatpush1.msra.mxu0 0.0
    %100 = vmatprep.subr.mxu0 0.0
    %101 = vmatpush1.msra.mxu0 0.0
    %102 = vmatprep.subr.mxu0 0.0
    %103 = vmatpush1.msra.mxu0 0.0
    %104 = vmatprep.subr.mxu0 0.0
    %105 = vmatpush1.msra.mxu0 0.0
    %106 = vmatprep.subr.mxu0 0.0
    %107 = vmatpush1.msra.mxu0 0.0
    %108 = vmatprep.mubr.f32.mxu0 0.0
    %109 = vmatmul.mubr.f32.gmra.mrb[0].mxu0 %v39
    %v110 = vpop.f32.mrb[0].mxu0
    %v111 = vadd.f32 %v35, %v110
    %v112 = vpop.f32.mrb[0].mxu0
    %113 = vmatprep.mubr.f32.mxu0 0.0
    %114 = vmatmul.mubr.f32.gmra.mrb[0].mxu0 %v42
    %v115 = vpop.f32.mrb[0].mxu0
    %v116 = vadd.f32 %v35, %v115
    %v117 = vpop.f32.mrb[0].mxu0
    %118 = vdwg.mxu0
    %v119 = vmul.f32 %v111, 0.5
    %v120 = vmul.f32 %v116, 0.5
    %v121 = vmul.f32 %v111, 0.70710677
    %v122 = vmul.f32 %v116, 0.70710677
    %v123 = verf.f32.pop %v121
    %v124 = verf.f32.pop %v122
    %v125 = vadd.f32 %v123, 1.0
    %v126 = vadd.f32 %v124, 1.0
    %v127 = vmul.f32 %v119, %v125
    %v128 = vmul.f32 %v120, %v126
    %129 = vst [vmem:[#allocation2] sm:$0xff] %v127
    %130 = vst [vmem:[#allocation2 + $0x8] sm:$0xff] %v128
  $region25: #{feature_ir_layer.1} parent=0 // pred_fallthru
    _
  %v131 = vld [vmem:[#allocation2] sm:$0xff]
  %v132 = vld [vmem:[#allocation2 + $0x8] sm:$0xff]
  %v133 = vld [vmem:[%s3] sm:$0xff]
  %v134 = vld [vmem:[%s3 + $0x8] sm:$0xff]
  %v135 = vld [vmem:[%s3 + $0x10] sm:$0xff]
  %v136 = vld [vmem:[%s3 + $0x18] sm:$0xff]
  %v137 = vld [vmem:[%s3 + $0x20] sm:$0xff]
  %v138 = vld [vmem:[%s3 + $0x28] sm:$0xff]
  %v139 = vld [vmem:[%s3 + $0x30] sm:$0xff]
  %v140 = vld [vmem:[%s3 + $0x38] sm:$0xff]
  %v141 = vld [vmem:[%s3 + $0x40] sm:$0xff]
  %v142 = vld [vmem:[%s3 + $0x48] sm:$0xff]
  %v143 = vld [vmem:[%s3 + $0x50] sm:$0xff]
  %v144 = vld [vmem:[%s3 + $0x58] sm:$0xff]
  %v145 = vld [vmem:[%s3 + $0x60] sm:$0xff]
  %v146 = vld [vmem:[%s3 + $0x68] sm:$0xff]
  %v147 = vld [vmem:[%s3 + $0x70] sm:$0xff]
  %v148 = vld [vmem:[%s3 + $0x78] sm:$0xff]
  %v149 = vld [vmem:[%s4] sm:$0x1]
  %v151 = vlaneseq
  %v152 = vshrl.u32 %v151, 7
  %v153 = vsub.s32 0, %v152
  %v154 = vrot.slane %v149, %v153
  %156 = vmatprep.subr.mxu0 0.0
  %157 = vmatpush1.msra.mxu0 %v133
  %158 = vmatprep.subr.mxu0 0.0
  %159 = vmatpush1.msra.mxu0 %v134
  %160 = vmatprep.subr.mxu0 0.0
  %161 = vmatpush1.msra.mxu0 %v135
  %162 = vmatprep.subr.mxu0 0.0
  %163 = vmatpush1.msra.mxu0 %v136
  %164 = vmatprep.subr.mxu0 0.0
  %165 = vmatpush1.msra.mxu0 %v137
  %166 = vmatprep.subr.mxu0 0.0
  %167 = vmatpush1.msra.mxu0 %v138
  %168 = vmatprep.subr.mxu0 0.0
  %169 = vmatpush1.msra.mxu0 %v139
  %170 = vmatprep.subr.mxu0 0.0
  %171 = vmatpush1.msra.mxu0 %v140
  %172 = vmatprep.subr.mxu0 0.0
  %173 = vmatpush1.msra.mxu0 %v141
  %174 = vmatprep.subr.mxu0 0.0
  %175 = vmatpush1.msra.mxu0 %v142
  %176 = vmatprep.subr.mxu0 0.0
  %177 = vmatpush1.msra.mxu0 %v143
  %178 = vmatprep.subr.mxu0 0.0
  %179 = vmatpush1.msra.mxu0 %v144
  %180 = vmatprep.subr.mxu0 0.0
  %181 = vmatpush1.msra.mxu0 %v145
  %182 = vmatprep.subr.mxu0 0.0
  %183 = vmatpush1.msra.mxu0 %v146
  %184 = vmatprep.subr.mxu0 0.0
  %185 = vmatpush1.msra.mxu0 %v147
  %186 = vmatprep.subr.mxu0 0.0
  %187 = vmatpush1.msra.mxu0 %v148
  %188 = vmatprep.subr.mxu0 0.0
  %189 = vmatpush1.msra.mxu0 0.0
  %190 = vmatprep.subr.mxu0 0.0
  %191 = vmatpush1.msra.mxu0 0.0
  %192 = vmatprep.subr.mxu0 0.0
  %193 = vmatpush1.msra.mxu0 0.0
  %194 = vmatprep.subr.mxu0 0.0
  %195 = vmatpush1.msra.mxu0 0.0
  %196 = vmatprep.subr.mxu0 0.0
  %197 = vmatpush1.msra.mxu0 0.0
  %198 = vmatprep.subr.mxu0 0.0
  %199 = vmatpush1.msra.mxu0 0.0
  %200 = vmatprep.subr.mxu0 0.0
  %201 = vmatpush1.msra.mxu0 0.0
  %202 = vmatprep.subr.mxu0 0.0
  %203 = vmatpush1.msra.mxu0 0.0
  %204 = vmatprep.subr.mxu0 0.0
  %205 = vmatpush1.msra.mxu0 0.0
  %206 = vmatprep.subr.mxu0 0.0
  %207 = vmatpush1.msra.mxu0 0.0
  %208 = vmatprep.subr.mxu0 0.0
  %209 = vmatpush1.msra.mxu0 0.0
  %210 = vmatprep.subr.mxu0 0.0
  %211 = vmatpush1.msra.mxu0 0.0
  %212 = vmatprep.subr.mxu0 0.0
  %213 = vmatpush1.msra.mxu0 0.0
  %214 = vmatprep.subr.mxu0 0.0
  %215 = vmatpush1.msra.mxu0 0.0
  %216 = vmatprep.subr.mxu0 0.0
  %217 = vmatpush1.msra.mxu0 0.0
  %218 = vmatprep.subr.mxu0 0.0
  %219 = vmatpush1.msra.mxu0 0.0
  %220 = vmatprep.mubr.f32.mxu0 0.0
  %221 = vmatmul.mubr.f32.gmra.mrb[0].mxu0 %v131
  %v222 = vpop.f32.mrb[0].mxu0
  %v223 = vadd.f32 %v154, %v222
  %v224 = vpop.f32.mrb[0].mxu0
  %225 = vmatprep.mubr.f32.mxu0 0.0
  %226 = vmatmul.mubr.f32.gmra.mrb[0].mxu0 %v132
  %v227 = vpop.f32.mrb[0].mxu0
  %v228 = vadd.f32 %v154, %v227
  %v229 = vpop.f32.mrb[0].mxu0
  %230 = vdwg.mxu0
  %231 = vst [vmem:[%s5] sm:$0xff] %v223
  %232 = vst [vmem:[%s5 + $0x8] sm:$0xff] %v228
  // Predicated region
  $region26: #{feature_ir_layer.1} parent=0 // pred_check
    _
  $region27: #{feature_ir_layer.1} parent=0 // pred_check_branch
    %234 = sbr.rel (0) target = $region29
  $region28: #{feature_ir_layer.1} parent=0 // pred_region
    _
  $region29: #{feature_ir_layer.1} parent=0 // pred_fallthru
    _
  // Predicated region
  $region30: #{feature_ir_layer.1} parent=0 // pred_check
    _
  $region31: #{feature_ir_layer.1} parent=0 // pred_check_branch
    %236 = sbr.rel (0) target = $region33
  $region32: #{feature_ir_layer.1} parent=0 // pred_region
    _
  $region33: #{feature_ir_layer.1} parent=0 // pred_fallthru
    _

</llo_original>
